<compile_context>
chip_gen: v7x
topology: tpu7x:2x2x1
jax: 0.10.0
libtpu: 0.0.40
codegen_flags: <defaults>
</compile_context>

<pallas_src>
import jax
import jax.numpy as jnp
import numpy as np
from jax.experimental import pallas as pl
from jax.experimental.pallas import tpu as pltpu


def _make_mix_kernel(tr: int, r: int):
    """Mix one (tr, 128) row block of the flattened batch.

    Grid = (num_splits, blocks_per_split).  The inner axis is sequential and a
    VMEM carry (one slot per split) holds the last `r` rows (== one sample) of
    the previous block, so the roll-by-one-sample needs only one read stream.
    """

    def kernel(lam_ref, prime_ref, x_ref, o_ref, carry_ref):
        s = pl.program_id(0)
        i = pl.program_id(1)
        lam0 = lam_ref[0]
        lam1 = lam_ref[1]

        # Prime the carry for this split's first block with the "previous"
        # sample (last sample of the previous split / of the whole batch).
        @pl.when(i == 0)
        def _():
            carry_ref[s] = prime_ref[...]

        # Rows [0, r): rolled source lives in the carry.
        o_ref[0:r, :] = (x_ref[0:r, :] * lam0 +
                         carry_ref[s] * lam1).astype(o_ref.dtype)
        if tr > r:
            # Rows [r, tr): rolled source is r rows above, inside this block.
            o_ref[r:tr, :] = (x_ref[r:tr, :] * lam0 +
                              x_ref[0:tr - r, :] * lam1).astype(o_ref.dtype)
        # Tail of this block feeds the first r rows of the next block.
        carry_ref[s] = x_ref[tr - r:tr, :]

    return kernel


def _choose_block_rows(split_rows, r, sub, itemsize, target_bytes):
    """Largest TR with sub | TR, r <= TR <= split_rows, TR | split_rows and
    TR*128*itemsize <= target_bytes (unless that would force TR < r)."""
    max_rows = max(r, target_bytes // (128 * itemsize))
    max_rows = min(max_rows, split_rows)
    cand = (max_rows // sub) * sub
    while cand >= r:
        if split_rows % cand == 0:
            return cand
        cand -= sub
    return r  # r always divides split_rows and is a multiple of sub


def _mix_plain(batch, lam):
    rolled = jnp.roll(batch, 1, axis=0)
    return (batch * lam[0] + rolled * lam[1]).astype(batch.dtype)


def random_mixup_dct(batch, target, num_classes, alpha=1.0, *, key,
                     min_pallas_bytes=1 << 18,
                     target_block_bytes=2 << 20):
    """JAX/Pallas equivalent of RandomMixup_DCT.forward (single-tensor batch).

    Returns (mixed_batch, mixed_target, lambda_param)."""
    if num_classes < 1:
        raise ValueError(f"num_classes must be positive, got {num_classes}")
    if alpha <= 0:
        raise ValueError("Alpha param can't be zero.")
    if target.ndim != 1:
        raise ValueError(f"Target ndim should be 1. Got {target.ndim}")

    B = batch.shape[0]
    F = int(np.prod(batch.shape[1:]))
    itemsize = jnp.dtype(batch.dtype).itemsize
    total_bytes = B * F * itemsize

    # lambda ~ Dirichlet([alpha, alpha]) (torch._sample_dirichlet equivalent),
    # sorted descending so lam[0] >= lam[1].
    g = jax.random.gamma(key, alpha, shape=(2,), dtype=jnp.float32)
    lam = g / jnp.sum(g)
    lam = jnp.sort(lam)[::-1].astype(jnp.float32)

    # dtype-aware sublane tile: f32 -> 8 rows, bf16 -> 16, int8/fp8 -> 32.
    sub = (8 * 4) // itemsize if itemsize in (1, 2, 4) else 0
    use_pallas = (
        itemsize in (1, 2, 4)
        and F % 128 == 0
        and (F // 128) % sub == 0
        and total_bytes >= min_pallas_bytes
    )

    if use_pallas:
        R = F // 128                       # rows per sample in the (rows, 128) slab
        total_rows = B * R
        # v7x: one contiguous half of the batch per TensorCore (harmless on 1-TC chips).
        num_splits = 2 if (B % 2 == 0 and B >= 2) else 1
        split_samples = B // num_splits
        split_rows = split_samples * R

        TR = _choose_block_rows(split_rows, R, sub, itemsize, target_block_bytes)
        blocks_per_split = split_rows // TR

        # VMEM: x (2 bufs) + out (2 bufs) + prime (2 bufs) + carry slots.
        est_vmem = (4 * TR + (2 + num_splits) * R) * 128 * itemsize
        if est_vmem > 40 * 1024 * 1024:
            # TODO(synk): per-sample size too large for the carry scheme's VMEM
            # budget (v7x: 64 MiB physical); fall back to fused XLA elementwise.
            use_pallas = False
        else:
            vmem_limit = int(min(48 * 1024 * 1024,
                                 max(32 * 1024 * 1024, est_vmem + (8 << 20))))

    if use_pallas:
        x = batch.reshape(total_rows, 128)
        cost = pl.CostEstimate(
            flops=3 * total_rows * 128,
            transcendentals=0,
            bytes_accessed=(2 * total_rows + num_splits * R) * 128 * itemsize,
        )
        mixed_flat = pl.pallas_call(
            _make_mix_kernel(TR, R),
            out_shape=jax.ShapeDtypeStruct((total_rows, 128), batch.dtype),
            grid=(num_splits, blocks_per_split),
            in_specs=[
                pl.BlockSpec(memory_space=pltpu.MemorySpace.SMEM),    # lambda (2,)
                # one-sample priming block: last sample of the previous split
                pl.BlockSpec((R, 128),
                             lambda s, i: ((s * split_samples + B - 1) % B, 0)),
                # main (single) read stream
                pl.BlockSpec((TR, 128),
                             lambda s, i: (s * blocks_per_split + i, 0)),
            ],
            out_specs=pl.BlockSpec((TR, 128),
                                   lambda s, i: (s * blocks_per_split + i, 0)),
            scratch_shapes=[pltpu.VMEM((num_splits, R, 128), batch.dtype)],
            compiler_params=pltpu.CompilerParams(
                dimension_semantics=("parallel", "arbitrary"),
                vmem_limit_bytes=vmem_limit,
            ),
            cost_estimate=cost,
        )(lam, x, x)
        mixed_batch = mixed_flat.reshape(batch.shape)
    else:
        # Tiny or awkwardly-shaped tensors: a fused XLA elementwise beats a
        # Pallas launch (per-step pipeline overhead, masked partial stores).
        mixed_batch = _mix_plain(batch, lam)

    # Target mix: (B, num_classes) is a few KiB -- plain JAX.  The reference
    # module casts the one-hot to the batch dtype, so we do too.
    oh = jax.nn.one_hot(target, num_classes, dtype=batch.dtype)
    mixed_target = (oh * lam[0] + jnp.roll(oh, 1, axis=0) * lam[1]).astype(batch.dtype)

    # Note: forward() always mixes (the documented `p` is unused in the spec).
    return mixed_batch, mixed_target, lam


if __name__ == "__main__":
    key = jax.random.PRNGKey(0)
    k_data, k_tgt, k_lam = jax.random.split(key, 3)

    # Small shapes consistent with the module's (B, C, H, W, KH, KW) DCT layout.
    B, C, H, W, KH, KW = 4, 4, 4, 4, 8, 8
    num_classes = 10

    batch = jax.random.normal(k_data, (B, C, H, W, KH, KW), dtype=jnp.float32)
    target = jax.random.randint(k_tgt, (B,), 0, num_classes, dtype=jnp.int32)

    # min_pallas_bytes=0 forces the Pallas path even at this tiny demo size.
    mixed_batch, mixed_target, lam = random_mixup_dct(
        batch, target, num_classes, alpha=1.0, key=k_lam, min_pallas_bytes=0)
    jax.block_until_ready((mixed_batch, mixed_target))

    # Pure-JAX reference of the forward semantics.
    ref_batch = lam[0] * batch + lam[1] * jnp.roll(batch, 1, axis=0)
    oh = jax.nn.one_hot(target, num_classes, dtype=batch.dtype)
    ref_target = lam[0] * oh + lam[1] * jnp.roll(oh, 1, axis=0)
    np.testing.assert_allclose(np.asarray(mixed_batch), np.asarray(ref_batch),
                               rtol=1e-6, atol=1e-6)
    np.testing.assert_allclose(np.asarray(mixed_target), np.asarray(ref_target),
                               rtol=1e-6, atol=1e-6)

    # Second run with minimal blocks (TR == R, several blocks per split) to
    # exercise the carry chain across sequential grid steps.
    mixed_batch2, _, lam2 = random_mixup_dct(
        batch, target, num_classes, alpha=1.0, key=k_lam,
        min_pallas_bytes=0, target_block_bytes=1)
    jax.block_until_ready(mixed_batch2)
    ref_batch2 = lam2[0] * batch + lam2[1] * jnp.roll(batch, 1, axis=0)
    np.testing.assert_allclose(np.asarray(mixed_batch2), np.asarray(ref_batch2),
                               rtol=1e-6, atol=1e-6)

    print("KERNEL_OK")
</pallas_src>

<mosaic_0001>
module attributes {stable_mosaic.version = 11 : i64} {
  func.func @kernel(%arg0: i32, %arg1: i32, %arg2: memref<2xf32, #tpu.memory_space<smem>>, %arg3: memref<32x128xf32, #tpu.memory_space<vmem>>, %arg4: memref<64x128xf32, #tpu.memory_space<vmem>>, %arg5: memref<64x128xf32, #tpu.memory_space<vmem>>, %arg6: memref<2x32x128xf32, #tpu.memory_space<vmem>>) attributes {dimension_semantics = [#tpu.dimension_semantics<parallel>, #tpu.dimension_semantics<arbitrary>], iteration_bounds = array<i64: 2, 1>, scalar_prefetch = 0 : i64, scratch_operands = 1 : i64, tpu.core_type = #tpu.core_type<tc>, window_params = [{transform_indices = @transform_0, window_bounds = array<i64: 2>}, {transform_indices = @transform_1, window_bounds = array<i64: 32, 128>}, {transform_indices = @transform_2, window_bounds = array<i64: 64, 128>}, {transform_indices = @transform_3, window_bounds = array<i64: 64, 128>}]} {
    %c0 = arith.constant 0 : index
    %0 = memref.load %arg2[%c0] : memref<2xf32, #tpu.memory_space<smem>>
    %c1 = arith.constant 1 : index
    %1 = memref.load %arg2[%c1] : memref<2xf32, #tpu.memory_space<smem>>
    %c0_i32 = arith.constant 0 : i32
    %2 = arith.cmpi eq, %arg1, %c0_i32 : i32
    %3 = arith.extui %2 : i1 to i32
    %c0_i32_0 = arith.constant 0 : i32
    %4 = arith.cmpi ne, %3, %c0_i32_0 : i32
    scf.if %4 {
      %c0_16 = arith.constant 0 : index
      %c0_17 = arith.constant 0 : index
      %28 = vector.load %arg3[%c0_16, %c0_17] : memref<32x128xf32, #tpu.memory_space<vmem>>, vector<32x128xf32>
      %29 = arith.index_cast %arg0 : i32 to index
      %c0_18 = arith.constant 0 : index
      %c0_19 = arith.constant 0 : index
      %30 = vector.load %arg6[%29, %c0_18, %c0_19] : memref<2x32x128xf32, #tpu.memory_space<vmem>>, vector<1x32x128xf32>
      %31 = vector.shape_cast %30 : vector<1x32x128xf32> to vector<32x128xf32>
      %32 = vector.shape_cast %28 : vector<32x128xf32> to vector<1x32x128xf32>
      tpu.vector_store %arg6[%29, %c0_18, %c0_19], %32 {strides = array<i32>} : memref<2x32x128xf32, #tpu.memory_space<vmem>>, vector<1x32x128xf32>,
    } else {
    }
    %c0_1 = arith.constant 0 : index
    %c0_2 = arith.constant 0 : index
    %5 = vector.load %arg4[%c0_1, %c0_2] : memref<64x128xf32, #tpu.memory_space<vmem>>, vector<32x128xf32>
    %6 = vector.broadcast %0 : f32 to vector<32x128xf32>
    %7 = arith.mulf %5, %6 : vector<32x128xf32>
    %8 = arith.index_cast %arg0 : i32 to index
    %c0_3 = arith.constant 0 : index
    %c0_4 = arith.constant 0 : index
    %9 = vector.load %arg6[%8, %c0_3, %c0_4] : memref<2x32x128xf32, #tpu.memory_space<vmem>>, vector<1x32x128xf32>
    %10 = vector.shape_cast %9 : vector<1x32x128xf32> to vector<32x128xf32>
    %11 = vector.broadcast %1 : f32 to vector<32x128xf32>
    %12 = arith.mulf %10, %11 : vector<32x128xf32>
    %13 = arith.addf %7, %12 : vector<32x128xf32>
    %c0_5 = arith.constant 0 : index
    %c0_6 = arith.constant 0 : index
    %14 = vector.load %arg5[%c0_5, %c0_6] : memref<64x128xf32, #tpu.memory_space<vmem>>, vector<32x128xf32>
    tpu.vector_store %arg5[%c0_5, %c0_6], %13 {strides = array<i32>} : memref<64x128xf32, #tpu.memory_space<vmem>>, vector<32x128xf32>,
    %c32 = arith.constant 32 : index
    %c0_7 = arith.constant 0 : index
    %15 = vector.load %arg4[%c32, %c0_7] : memref<64x128xf32, #tpu.memory_space<vmem>>, vector<32x128xf32>
    %16 = vector.broadcast %0 : f32 to vector<32x128xf32>
    %17 = arith.mulf %15, %16 : vector<32x128xf32>
    %c0_8 = arith.constant 0 : index
    %c0_9 = arith.constant 0 : index
    %18 = vector.load %arg4[%c0_8, %c0_9] : memref<64x128xf32, #tpu.memory_space<vmem>>, vector<32x128xf32>
    %19 = vector.broadcast %1 : f32 to vector<32x128xf32>
    %20 = arith.mulf %18, %19 : vector<32x128xf32>
    %21 = arith.addf %17, %20 : vector<32x128xf32>
    %c32_10 = arith.constant 32 : index
    %c0_11 = arith.constant 0 : index
    %22 = vector.load %arg5[%c32_10, %c0_11] : memref<64x128xf32, #tpu.memory_space<vmem>>, vector<32x128xf32>
    tpu.vector_store %arg5[%c32_10, %c0_11], %21 {strides = array<i32>} : memref<64x128xf32, #tpu.memory_space<vmem>>, vector<32x128xf32>,
    %c32_12 = arith.constant 32 : index
    %c0_13 = arith.constant 0 : index
    %23 = vector.load %arg4[%c32_12, %c0_13] : memref<64x128xf32, #tpu.memory_space<vmem>>, vector<32x128xf32>
    %24 = arith.index_cast %arg0 : i32 to index
    %c0_14 = arith.constant 0 : index
    %c0_15 = arith.constant 0 : index
    %25 = vector.load %arg6[%24, %c0_14, %c0_15] : memref<2x32x128xf32, #tpu.memory_space<vmem>>, vector<1x32x128xf32>
    %26 = vector.shape_cast %25 : vector<1x32x128xf32> to vector<32x128xf32>
    %27 = vector.shape_cast %23 : vector<32x128xf32> to vector<1x32x128xf32>
    tpu.vector_store %arg6[%24, %c0_14, %c0_15], %27 {strides = array<i32>} : memref<2x32x128xf32, #tpu.memory_space<vmem>>, vector<1x32x128xf32>,
    return
  }
  func.func @transform_0(%arg0: i32, %arg1: i32) -> i32 {
    %c0_i32 = arith.constant 0 : i32
    %c0_i32_0 = arith.constant 0 : i32
    return %c0_i32 : i32
  }
  func.func @transform_1(%arg0: i32, %arg1: i32) -> (i32, i32) {
    %c2_i32 = arith.constant 2 : i32
    %0 = arith.muli %arg0, %c2_i32 : i32
    %c4_i32 = arith.constant 4 : i32
    %1 = arith.addi %0, %c4_i32 : i32
    %c1_i32 = arith.constant 1 : i32
    %2 = arith.subi %1, %c1_i32 : i32
    %c4_i32_0 = arith.constant 4 : i32
    %c0_i32 = arith.constant 0 : i32
    %3 = arith.cmpi eq, %c4_i32_0, %c0_i32 : i32
    %c1_i32_1 = arith.constant 1 : i32
    %4 = arith.select %3, %c1_i32_1, %c4_i32_0 : i32
    %5 = arith.remsi %2, %4 : i32
    %c0_i32_2 = arith.constant 0 : i32
    %6 = arith.cmpi ne, %5, %c0_i32_2 : i32
    %c0_i32_3 = arith.constant 0 : i32
    %7 = arith.cmpi slt, %5, %c0_i32_3 : i32
    %c0_i32_4 = arith.constant 0 : i32
    %8 = arith.cmpi slt, %4, %c0_i32_4 : i32
    %9 = arith.xori %7, %8 : i1
    %10 = arith.andi %9, %6 : i1
    %11 = arith.addi %5, %4 : i32
    %12 = arith.select %10, %11, %5 : i32
    %c0_i32_5 = arith.constant 0 : i32
    %c0_i32_6 = arith.constant 0 : i32
    return %12, %c0_i32_5 : i32, i32
  }
  func.func @transform_2(%arg0: i32, %arg1: i32) -> (i32, i32) {
    %c1_i32 = arith.constant 1 : i32
    %0 = arith.muli %arg0, %c1_i32 : i32
    %1 = arith.addi %0, %arg1 : i32
    %c0_i32 = arith.constant 0 : i32
    %c0_i32_0 = arith.constant 0 : i32
    return %1, %c0_i32 : i32, i32
  }
  func.func @transform_3(%arg0: i32, %arg1: i32) -> (i32, i32) {
    %c1_i32 = arith.constant 1 : i32
    %0 = arith.muli %arg0, %c1_i32 : i32
    %1 = arith.addi %0, %arg1 : i32
    %c0_i32 = arith.constant 0 : i32
    %c0_i32_0 = arith.constant 0 : i32
    return %1, %c0_i32 : i32, i32
  }
}

</mosaic_0001>

<llo_original>
// kernel: tpu_custom_call.1
$region0: #{tpu_custom_call.1}
  #allocation0 [shape = 'u32[]', space=smem, size = 0x4, offset = 0x4, fixed_abs, tag = 'smem constant byte address 0x4 - core index']
  #allocation1 [shape = 'u32[144,128]{1,0:T(1,128)}', space=vmem, size = 0x12000, scoped, tag = 'internal scratch']
  #allocation2 [shape = 'f32[2,32,128]{2,1,0:T(8,128)}', space=vmem, size = 0x8000, scoped, tag = 'scratch operand']
  %s0 = inlined_call_operand.hbm [shape: f32[2], index: 0, kind: input, shape index: {}]
  %s1 = inlined_call_operand.hbm [shape: f32[128,128], index: 1, kind: input, shape index: {}]
  %s2 = inlined_call_operand.hbm [shape: f32[128,128], index: 2, kind: input, shape index: {}]
  %s3 = inlined_call_operand.hbm [shape: f32[128,128], index: 3, kind: output, shape index: {}]
  %s4 = sld [smem:[#allocation0]]
  $region61: #{tpu_custom_call.1} parent=0
    _
  %s6 = ssub.s32 1, %s4
  %s7 = scalar_select 0, %s6, %s4
  $region1: #{tpu_custom_call.1} parent=0
    #allocation3 [shape = 'u8[512]{0}', space=smem, size = 0x200, scoped, tag = 'input window, operand 0, single buffered']
    #allocation4 [shape = 's32[2]{0}', space=sflag, size = 0x8, scoped, tag = 'scoped memory for tpu_custom_call.1']
    #allocation5 [shape = 's32[2]{0}', space=sflag, size = 0x8, scoped, tag = 'scoped memory for tpu_custom_call.1']
    #allocation6 [shape = 's32[2]{0}', space=sflag, size = 0x8, scoped, tag = 'scoped memory for tpu_custom_call.1']
    #allocation7 [shape = 'u8[32768]{0}', space=vmem, size = 0x8000, scoped, tag = 'input window, operand 1']
    #allocation8 [shape = 'u8[65536]{0}', space=vmem, size = 0x10000, scoped, tag = 'input window, operand 2']
    #allocation9 [shape = 's32[2]{0}', space=sflag, size = 0x8, scoped, tag = 'scoped memory for tpu_custom_call.1']
    #allocation10 [shape = 'u8[65536]{0}', space=vmem, size = 0x10000, scoped, tag = 'output window, operand 0']
    %8 = vsyncpa [#allocation6], 0
    %9 = vsyncpa [#allocation4], 0
    %s10 = scalar_lea.sflag [#allocation4], 1
    %11 = vsyncpa %s10, 0
    %12 = vsyncpa [#allocation9], 0
    %s13 = scalar_lea.sflag [#allocation9], 1
    %14 = vsyncpa %s13, 0
    %15 = vsyncpa [#allocation5], 0
    %s16 = scalar_lea.sflag [#allocation5], 1
    %17 = vsyncpa %s16, 0
    loop: start=0, step=1, limit=4
    $region2: #{tpu_custom_call.1} parent=1 // loop_pre_header
      _
    $region3: #{tpu_custom_call.1} parent=1 // loop_header
      %s19 = sphi 0, %s23
      %p20 = scmp.ge.s32.totalorder %s19, 4
      %s26 = sphi 0, %s38
      %s27 = sphi 0, %s34
      %s28 = sphi 0, %s26
      %s29 = sphi 0, %s27
      %s30 = sphi 0, %s28
      %s31 = sphi 0, %s29
      %s39 = sphi 0, %s39
      %s41 = sphi 0, %s39
      %s42 = sphi 0, %s41
      %s56 = sphi 0, %s42
      %s90 = sphi 0, %s92
      %s93 = sphi 0, %s90
      %s94 = sphi 0, %s93
      %s110 = sphi 0, %s94
      %s118 = sphi 0, %s120
      %s121 = sphi 0, %s118
      %s122 = sphi 0, %s121
      %s138 = sphi 0, %s122
      %s146 = sphi 0, %s148
      %s149 = sphi 0, %s146
      %s150 = sphi 0, %s149
      %s166 = sphi 0, %s150
    $region4: #{tpu_custom_call.1} parent=1 // loop_header_branch
      %22 = sbr.rel (%p20) target = $region8
    $region5: #{tpu_custom_call.1} parent=1 // loop_body
      %s24 = ssub.s32 %s19, 1
      %s25 = ssub.s32 %s19, 2
      %s32 = sadd.s32 1, %s27
      %p33 = scmp.ge.s32.totalorder %s32, 1
      %s34 = scalar_select %p33, 0, %s32
      %s35 = sadd.s32 1, %s26
      %s36 = scalar_select %p33, %s35, %s26
      %p37 = scmp.ge.s32.totalorder %s36, 2
      %s38 = scalar_select %p37, 0, %s36
      %s40 = sadd.s32 %s39, 1
      %p43 = scmp.eq.s32.totalorder %s19, 1
      %p44 = scmp.ne.s32.totalorder %s39, %s41
      %p45 = scmp.eq.s32.totalorder %s19, 0
      %p46 = por %p44, %p45
      %p47 = scmp.ne.s32.totalorder %s39, %s41
      %p48 = scmp.eq.s32.totalorder %s24, 1
      %p49 = por %p47, %p48
      %p50 = scmp.ne.s32.totalorder %s41, %s42
      %p51 = scmp.eq.s32.totalorder %s24, 0
      %p52 = por %p50, %p51
      %p53 = scmp.ne.s32.totalorder %s41, %s42
      %p54 = scmp.eq.s32.totalorder %s25, 1
      %p55 = por %p53, %p54
      %p57 = scmp.ne.s32.totalorder %s42, %s56
      %p58 = scmp.eq.s32.totalorder %s25, 0
      %p59 = por %p57, %p58
      %s60 = smul.u32 %s26, 2
      %s61 = sadd.s32 %s60, 3
      %p62 = scmp.lt.s32.totalorder %s61, 0
      %s63 = ssub.s32 0, %s61
      %s64 = scalar_select %p62, %s63, %s61
      %s65 = sand.u32 %s64, 3
      %s66 = ssub.s32 0, %s65
      %s67 = scalar_select %p62, %s66, %s65
      %p68 = scmp.ne.s32.totalorder %s67, 0
      %p69 = scmp.lt.s32.totalorder %s67, 0
      %p70 = pnand %p69, %p68
      %p71 = pneg %p70
      %s72 = sadd.s32 %s67, 4
      %s73 = scalar_select %p71, %s72, %s67
      %s74 = smul.u32 %s38, 2
      %s75 = sadd.s32 %s74, 3
      %p76 = scmp.lt.s32.totalorder %s75, 0
      %s77 = ssub.s32 0, %s75
      %s78 = scalar_select %p76, %s77, %s75
      %s79 = sand.u32 %s78, 3
      %s80 = ssub.s32 0, %s79
      %s81 = scalar_select %p76, %s80, %s79
      %p82 = scmp.ne.s32.totalorder %s81, 0
      %p83 = scmp.lt.s32.totalorder %s81, 0
      %p84 = pnand %p83, %p82
      %p85 = pneg %p84
      %s86 = sadd.s32 %s81, 4
      %s87 = scalar_select %p85, %s86, %s81
      %s88 = ssub.s32 %s73, %s87
      %p89 = scmp.eq.s32.totalorder %s88, 0
      %s91 = sadd.s32 %s90, 1
      %s92 = scalar_select %p89, %s90, %s91
      %p95 = pneg %p89
      %p96 = scmp.eq.s32.totalorder %s19, 1
      %p97 = por %p95, %p96
      %p98 = scmp.ne.s32.totalorder %s90, %s93
      %p99 = scmp.eq.s32.totalorder %s19, 0
      %p100 = por %p98, %p99
      %p101 = scmp.ne.s32.totalorder %s90, %s93
      %p102 = scmp.eq.s32.totalorder %s24, 1
      %p103 = por %p101, %p102
      %p104 = scmp.ne.s32.totalorder %s93, %s94
      %p105 = scmp.eq.s32.totalorder %s24, 0
      %p106 = por %p104, %p105
      %p107 = scmp.ne.s32.totalorder %s93, %s94
      %p108 = scmp.eq.s32.totalorder %s25, 1
      %p109 = por %p107, %p108
      %p111 = scmp.ne.s32.totalorder %s94, %s110
      %p112 = scmp.eq.s32.totalorder %s25, 0
      %p113 = por %p111, %p112
      %s114 = sadd.s32 %s26, %s27
      %s115 = sadd.s32 %s38, %s34
      %s116 = ssub.s32 %s114, %s115
      %p117 = scmp.eq.s32.totalorder %s116, 0
      %s119 = sadd.s32 %s118, 1
      %s120 = scalar_select %p117, %s118, %s119
      %p123 = pneg %p117
      %p124 = scmp.eq.s32.totalorder %s19, 1
      %p125 = por %p123, %p124
      %p126 = scmp.ne.s32.totalorder %s118, %s121
      %p127 = scmp.eq.s32.totalorder %s19, 0
      %p128 = por %p126, %p127
      %p129 = scmp.ne.s32.totalorder %s118, %s121
      %p130 = scmp.eq.s32.totalorder %s24, 1
      %p131 = por %p129, %p130
      %p132 = scmp.ne.s32.totalorder %s121, %s122
      %p133 = scmp.eq.s32.totalorder %s24, 0
      %p134 = por %p132, %p133
      %p135 = scmp.ne.s32.totalorder %s121, %s122
      %p136 = scmp.eq.s32.totalorder %s25, 1
      %p137 = por %p135, %p136
      %p139 = scmp.ne.s32.totalorder %s122, %s138
      %p140 = scmp.eq.s32.totalorder %s25, 0
      %p141 = por %p139, %p140
      %s142 = sadd.s32 %s26, %s27
      %s143 = sadd.s32 %s38, %s34
      %s144 = ssub.s32 %s142, %s143
      %p145 = scmp.eq.s32.totalorder %s144, 0
      %s147 = sadd.s32 %s146, 1
      %s148 = scalar_select %p145, %s146, %s147
      %p151 = pneg %p145
      %p152 = scmp.eq.s32.totalorder %s19, 1
      %p153 = por %p151, %p152
      %p154 = scmp.ne.s32.totalorder %s146, %s149
      %p155 = scmp.eq.s32.totalorder %s19, 0
      %p156 = por %p154, %p155
      %p157 = scmp.ne.s32.totalorder %s146, %s149
      %p158 = scmp.eq.s32.totalorder %s24, 1
      %p159 = por %p157, %p158
      %p160 = scmp.ne.s32.totalorder %s149, %s150
      %p161 = scmp.eq.s32.totalorder %s24, 0
      %p162 = por %p160, %p161
      %p163 = scmp.ne.s32.totalorder %s149, %s150
      %p164 = scmp.eq.s32.totalorder %s25, 1
      %p165 = por %p163, %p164
      %p167 = scmp.ne.s32.totalorder %s150, %s166
      %p168 = scmp.eq.s32.totalorder %s25, 0
      %p169 = por %p167, %p168
      %p170 = scmp.le.s32.totalorder 1, %s19
      %p171 = scmp.lt.s32.totalorder %s19, 3
      %p172 = pnand %p170, %p171
      %p173 = pneg %p172
      // Predicated region
      $region9: #{tpu_custom_call.1} parent=5 // pred_check
        _
      $region10: #{tpu_custom_call.1} parent=5 // pred_check_branch
        %175 = sbr.rel (%p172) target = $region12
      $region11: #{tpu_custom_call.1} parent=5 // pred_region
        %s176 = ssub.s32 %s19, 1
        // Predicated region
        $region13: #{tpu_custom_call.1} parent=11 // pred_check
          %p177 = pneg %p52
        $region14: #{tpu_custom_call.1} parent=11 // pred_check_branch
          %179 = sbr.rel (%p177) target = $region16
        $region15: #{tpu_custom_call.1} parent=11 // pred_region
          %s181 = ssub.s32 16, 16
          %182 = vsyncadd [#allocation6], %s181
          %185 = dma.hbm_to_smem %s0, 16, [#allocation3], [#allocation6]
        $region16: #{tpu_custom_call.1} parent=11 // pred_fallthru
          _
      $region12: #{tpu_custom_call.1} parent=5 // pred_fallthru
        _
      %p186 = scmp.lt.s32.totalorder %s19, 2
      // Predicated region
      $region17: #{tpu_custom_call.1} parent=5 // pred_check
        %p187 = pneg %p186
      $region18: #{tpu_custom_call.1} parent=5 // pred_check_branch
        %189 = sbr.rel (%p187) target = $region20
      $region19: #{tpu_custom_call.1} parent=5 // pred_region
        // Predicated region
        $region21: #{tpu_custom_call.1} parent=19 // pred_check
          %p190 = pneg %p100
        $region22: #{tpu_custom_call.1} parent=19 // pred_check_branch
          %192 = sbr.rel (%p190) target = $region24
        $region23: #{tpu_custom_call.1} parent=19 // pred_region
          %s193 = sand.u32 %s90, 1
          %s194 = scalar_lea.sflag [#allocation4], %s193
          %s195 = sand.u32 %s90, 1
          %s196 = smul.addr %s195, 32
          %s197 = scalar_lea.vmem [#allocation7], %s196
          %s198 = smul.u32 %s26, 2
          %s199 = sadd.s32 %s198, 3
          %p200 = scmp.lt.s32.totalorder %s199, 0
          %s201 = ssub.s32 0, %s199
          %s202 = scalar_select %p200, %s201, %s199
          %s203 = sand.u32 %s202, 3
          %s204 = ssub.s32 0, %s203
          %s205 = scalar_select %p200, %s204, %s203
          %p206 = scmp.ne.s32.totalorder %s205, 0
          %p207 = scmp.lt.s32.totalorder %s205, 0
          %p208 = pnand %p207, %p206
          %p209 = pneg %p208
          %s210 = sadd.s32 %s205, 4
          %s211 = scalar_select %p209, %s210, %s205
          %s212 = smul.u32 4, %s211
          %s214 = ssub.s32 512, 512
          %215 = vsyncadd %s194, %s214
          %s216 = smul.addr %s212, 128
          %s217 = scalar_lea.hbm %s1, %s216
          %s218 = sshll.u32 %s197, 4
          %s219 = int_to_ptr.vmem [resolvable:$true] %s218
          %224 = dma.hbm_to_vmem [thread:$0]  %s217, 512, %s219, %s194, 128, 128, 8
        $region24: #{tpu_custom_call.1} parent=19 // pred_fallthru
          _
        // Predicated region
        $region25: #{tpu_custom_call.1} parent=19 // pred_check
          %p225 = pneg %p128
        $region26: #{tpu_custom_call.1} parent=19 // pred_check_branch
          %227 = sbr.rel (%p225) target = $region28
        $region27: #{tpu_custom_call.1} parent=19 // pred_region
          %s228 = sand.u32 %s118, 1
          %s229 = scalar_lea.sflag [#allocation9], %s228
          %s230 = sand.u32 %s118, 1
          %s231 = smul.addr %s230, 64
          %s232 = scalar_lea.vmem [#allocation8], %s231
          %s233 = sadd.s32 %s26, %s27
          %s234 = smul.u32 8, %s233
          %s236 = ssub.s32 1024, 1024
          %237 = vsyncadd %s229, %s236
          %s238 = smul.addr %s234, 128
          %s239 = scalar_lea.hbm %s2, %s238
          %s240 = sshll.u32 %s232, 4
          %s241 = int_to_ptr.vmem [resolvable:$true] %s240
          %246 = dma.hbm_to_vmem [thread:$0]  %s239, 1024, %s241, %s229, 128, 128, 8
        $region28: #{tpu_custom_call.1} parent=19 // pred_fallthru
          _
      $region20: #{tpu_custom_call.1} parent=5 // pred_fallthru
        _
      %p247 = scmp.le.s32.totalorder 1, %s19
      %p248 = scmp.lt.s32.totalorder %s19, 3
      %p249 = pnand %p247, %p248
      %p250 = pneg %p249
      // Predicated region
      $region29: #{tpu_custom_call.1} parent=5 // pred_check
        _
      $region30: #{tpu_custom_call.1} parent=5 // pred_check_branch
        %252 = sbr.rel (%p249) target = $region32
      $region31: #{tpu_custom_call.1} parent=5 // pred_region
        %s253 = ssub.s32 %s19, 1
        // Predicated region
        $region33: #{tpu_custom_call.1} parent=31 // pred_check
          %p254 = pneg %p52
        $region34: #{tpu_custom_call.1} parent=31 // pred_check_branch
          %256 = sbr.rel (%p254) target = $region36
        $region35: #{tpu_custom_call.1} parent=31 // pred_region
          %257 = dma.done [#allocation6], 16
        $region36: #{tpu_custom_call.1} parent=31 // pred_fallthru
          _
        %s258 = sand.u32 %s93, 1
        %s259 = scalar_lea.sflag [#allocation4], %s258
        %s260 = sand.u32 %s93, 1
        %s261 = smul.addr %s260, 32
        %s262 = scalar_lea.vmem [#allocation7], %s261
        // Predicated region
        $region37: #{tpu_custom_call.1} parent=31 // pred_check
          %p263 = pneg %p106
        $region38: #{tpu_custom_call.1} parent=31 // pred_check_branch
          %265 = sbr.rel (%p263) target = $region40
        $region39: #{tpu_custom_call.1} parent=31 // pred_region
          %266 = dma.done %s259, 512
        $region40: #{tpu_custom_call.1} parent=31 // pred_fallthru
          _
        %s267 = sand.u32 %s121, 1
        %s268 = scalar_lea.sflag [#allocation9], %s267
        %s269 = sand.u32 %s121, 1
        %s270 = smul.addr %s269, 64
        %s271 = scalar_lea.vmem [#allocation8], %s270
        // Predicated region
        $region41: #{tpu_custom_call.1} parent=31 // pred_check
          %p272 = pneg %p134
        $region42: #{tpu_custom_call.1} parent=31 // pred_check_branch
          %274 = sbr.rel (%p272) target = $region44
        $region43: #{tpu_custom_call.1} parent=31 // pred_region
          %275 = dma.done %s268, 1024
        $region44: #{tpu_custom_call.1} parent=31 // pred_fallthru
          _
        %276 = sfence
        %p277 = pneg %p52
        %p278 = pneg %p49
        %s279 = sand.u32 %s93, 1
        %s280 = scalar_lea.sflag [#allocation4], %s279
        %s281 = sand.u32 %s93, 1
        %s282 = smul.addr %s281, 32
        %s283 = scalar_lea.vmem [#allocation7], %s282
        %p284 = pneg %p106
        %p285 = pneg %p103
        %s286 = sand.u32 %s121, 1
        %s287 = scalar_lea.sflag [#allocation9], %s286
        %s288 = sand.u32 %s121, 1
        %s289 = smul.addr %s288, 64
        %s290 = scalar_lea.vmem [#allocation8], %s289
        %p291 = pneg %p134
        %p292 = pneg %p131
        %p293 = pneg %p162
        %p294 = pneg %p159
        %s295 = sand.u32 %s149, 1
        %s296 = scalar_lea.sflag [#allocation5], %s295
        %s297 = sand.u32 %s149, 1
        %s298 = smul.addr %s297, 64
        %s299 = scalar_lea.vmem [#allocation10], %s298
        %s300 = smul.u32 %s28, 2
        %s301 = sadd.s32 %s300, 3
        %p302 = scmp.lt.s32.totalorder %s301, 0
        %s303 = ssub.s32 0, %s301
        %s304 = scalar_select %p302, %s303, %s301
        %s305 = sand.u32 %s304, 3
        %s306 = ssub.s32 0, %s305
        %s307 = scalar_select %p302, %s306, %s305
        %p308 = scmp.ne.s32.totalorder %s307, 0
        %p309 = scmp.lt.s32.totalorder %s307, 0
        %p310 = pnand %p309, %p308
        %p311 = pneg %p310
        %s312 = sadd.s32 %s307, 4
        %s313 = scalar_select %p311, %s312, %s307
        %s314 = smul.u32 4, %s313
        %s315 = sadd.s32 %s28, %s29
        %s316 = smul.u32 8, %s315
        %s317 = sadd.s32 %s28, %s29
        %s318 = smul.u32 8, %s317
        %s319 = sld [smem:[#allocation3]]
        %s320 = sld [smem:[#allocation3 + $0x1]]
        %p321 = scmp.eq.s32.totalorder %s29, 0
        // Predicated region
        $region45: #{tpu_custom_call.1} parent=31 // pred_check
          %p322 = pneg %p321
        $region46: #{tpu_custom_call.1} parent=31 // pred_check_branch
          %324 = sbr.rel (%p322) target = $region48
        $region47: #{tpu_custom_call.1} parent=31 // pred_region
          %v325 = vld [vmem:[%s262] sm:$0xff]
          %v326 = vld [vmem:[%s262 + $0x8] sm:$0xff]
          %v327 = vld [vmem:[%s262 + $0x10] sm:$0xff]
          %v328 = vld [vmem:[%s262 + $0x18] sm:$0xff]
          %s329 = smul.u32 %s28, 32
          %s330 = scalar_lea.vmem [#allocation2], %s329
          %331 = vst [vmem:[%s330] sm:$0xff] %v325
          %332 = vst [vmem:[%s330 + $0x8] sm:$0xff] %v326
          %333 = vst [vmem:[%s330 + $0x10] sm:$0xff] %v327
          %334 = vst [vmem:[%s330 + $0x18] sm:$0xff] %v328
        $region48: #{tpu_custom_call.1} parent=31 // pred_fallthru
          _
        %v335 = vld [vmem:[%s271] sm:$0xff]
        %v336 = vld [vmem:[%s271 + $0x8] sm:$0xff]
        %v337 = vld [vmem:[%s271 + $0x10] sm:$0xff]
        %v338 = vld [vmem:[%s271 + $0x18] sm:$0xff]
        %v339 = vstv %s319
        %v340 = vmul.f32 %v335, %v339
        %v341 = vmul.f32 %v336, %v339
        %v342 = vmul.f32 %v337, %v339
        %v343 = vmul.f32 %v338, %v339
        %s344 = smul.u32 %s28, 32
        %s345 = scalar_lea.vmem [#allocation2], %s344
        %v346 = vld [vmem:[%s345] sm:$0xff]
        %v347 = vld [vmem:[%s345 + $0x8] sm:$0xff]
        %v348 = vld [vmem:[%s345 + $0x10] sm:$0xff]
        %v349 = vld [vmem:[%s345 + $0x18] sm:$0xff]
        %v350 = vstv %s320
        %v351 = vmul.f32 %v346, %v350
        %v352 = vmul.f32 %v347, %v350
        %v353 = vmul.f32 %v348, %v350
        %v354 = vmul.f32 %v349, %v350
        %v355 = vadd.f32 %v340, %v351
        %v356 = vadd.f32 %v341, %v352
        %v357 = vadd.f32 %v342, %v353
        %v358 = vadd.f32 %v343, %v354
        %359 = vst [vmem:[%s299] sm:$0xff] %v355
        %360 = vst [vmem:[%s299 + $0x8] sm:$0xff] %v356
        %361 = vst [vmem:[%s299 + $0x10] sm:$0xff] %v357
        %362 = vst [vmem:[%s299 + $0x18] sm:$0xff] %v358
        %v363 = vld [vmem:[%s271 + $0x20] sm:$0xff]
        %v364 = vld [vmem:[%s271 + $0x28] sm:$0xff]
        %v365 = vld [vmem:[%s271 + $0x30] sm:$0xff]
        %v366 = vld [vmem:[%s271 + $0x38] sm:$0xff]
        %v367 = vmul.f32 %v363, %v339
        %v368 = vmul.f32 %v364, %v339
        %v369 = vmul.f32 %v365, %v339
        %v370 = vmul.f32 %v366, %v339
        %v371 = vld [vmem:[%s271] sm:$0xff]
        %v372 = vld [vmem:[%s271 + $0x8] sm:$0xff]
        %v373 = vld [vmem:[%s271 + $0x10] sm:$0xff]
        %v374 = vld [vmem:[%s271 + $0x18] sm:$0xff]
        %v375 = vmul.f32 %v371, %v350
        %v376 = vmul.f32 %v372, %v350
        %v377 = vmul.f32 %v373, %v350
        %v378 = vmul.f32 %v374, %v350
        %v379 = vadd.f32 %v367, %v375
        %v380 = vadd.f32 %v368, %v376
        %v381 = vadd.f32 %v369, %v377
        %v382 = vadd.f32 %v370, %v378
        %383 = vst [vmem:[%s299 + $0x20] sm:$0xff] %v379
        %384 = vst [vmem:[%s299 + $0x28] sm:$0xff] %v380
        %385 = vst [vmem:[%s299 + $0x30] sm:$0xff] %v381
        %386 = vst [vmem:[%s299 + $0x38] sm:$0xff] %v382
        %v387 = vld [vmem:[%s271 + $0x20] sm:$0xff]
        %v388 = vld [vmem:[%s271 + $0x28] sm:$0xff]
        %v389 = vld [vmem:[%s271 + $0x30] sm:$0xff]
        %v390 = vld [vmem:[%s271 + $0x38] sm:$0xff]
        %391 = vst [vmem:[%s345] sm:$0xff] %v387
        %392 = vst [vmem:[%s345 + $0x8] sm:$0xff] %v388
        %393 = vst [vmem:[%s345 + $0x10] sm:$0xff] %v389
        %394 = vst [vmem:[%s345 + $0x18] sm:$0xff] %v390
        %s395 = sand.u32 %s149, 1
        %s396 = scalar_lea.sflag [#allocation5], %s395
        %s397 = sand.u32 %s149, 1
        %s398 = smul.addr %s397, 64
        %s399 = scalar_lea.vmem [#allocation10], %s398
        // Predicated region
        $region49: #{tpu_custom_call.1} parent=31 // pred_check
          %p400 = pneg %p159
        $region50: #{tpu_custom_call.1} parent=31 // pred_check_branch
          %402 = sbr.rel (%p400) target = $region52
        $region51: #{tpu_custom_call.1} parent=31 // pred_region
          %s403 = sadd.s32 %s28, %s29
          %s404 = smul.u32 8, %s403
          %s406 = ssub.s32 1024, 1024
          %407 = vsyncadd %s396, %s406
          %s408 = smul.addr %s404, 128
          %s409 = scalar_lea.hbm %s3, %s408
          %s410 = sshll.u32 %s399, 4
          %s411 = int_to_ptr.vmem [resolvable:$true] %s410
          %416 = dma.vmem_to_hbm [thread:$0]  %s411, 1024, %s409, %s396, 128, 128, 8
        $region52: #{tpu_custom_call.1} parent=31 // pred_fallthru
          _
      $region32: #{tpu_custom_call.1} parent=5 // pred_fallthru
        _
      %p417 = scmp.le.s32.totalorder 2, %s19
      // Predicated region
      $region53: #{tpu_custom_call.1} parent=5 // pred_check
        %p418 = pneg %p417
      $region54: #{tpu_custom_call.1} parent=5 // pred_check_branch
        %420 = sbr.rel (%p418) target = $region56
      $region55: #{tpu_custom_call.1} parent=5 // pred_region
        %s421 = ssub.s32 %s19, 2
        // Predicated region
        $region57: #{tpu_custom_call.1} parent=55 // pred_check
          %p422 = pneg %p165
        $region58: #{tpu_custom_call.1} parent=55 // pred_check_branch
          %424 = sbr.rel (%p422) target = $region60
        $region59: #{tpu_custom_call.1} parent=55 // pred_region
          %s425 = sand.u32 %s150, 1
          %s426 = scalar_lea.sflag [#allocation5], %s425
          %s427 = sand.u32 %s150, 1
          %s428 = smul.addr %s427, 64
          %s429 = scalar_lea.vmem [#allocation10], %s428
          %430 = dma.done %s426, 1024
        $region60: #{tpu_custom_call.1} parent=55 // pred_fallthru
          _
      $region56: #{tpu_custom_call.1} parent=5 // pred_fallthru
        _
    $region6: #{tpu_custom_call.1} parent=1 // loop_footer
      %s23 = sadd.s32 1, %s19
    $region7: #{tpu_custom_call.1} parent=1 // loop_footer_branch
      %18 = sbr.rel target = $region3
    $region8: #{tpu_custom_call.1} parent=1 // loop_exit
      _
    %431 = vsyncpa [#allocation4], 1
    %s432 = scalar_lea.sflag [#allocation4], 1
    %433 = vsyncpa %s432, 1
    %434 = vsyncpa [#allocation9], 1
    %s435 = scalar_lea.sflag [#allocation9], 1
    %436 = vsyncpa %s435, 1
    %437 = vsyncpa [#allocation5], 1
    %s438 = scalar_lea.sflag [#allocation5], 1
    %439 = vsyncpa %s438, 1
    %440 = vsyncpa [#allocation6], 1
    %s441 = scalar_lea.sflag [#allocation6], 1
    %442 = vsyncpa %s441, 1

</llo_original>
